<compile_context>
chip_gen: v6e
topology: v6e:2x2x1
jax: 0.10.0
libtpu: 0.0.40
codegen_flags: <defaults>
</compile_context>

<pallas_src>
import functools

import jax
import jax.numpy as jnp
from jax import lax
from jax.experimental import pallas as pl
from jax.experimental.pallas import tpu as pltpu

LEAKY_SLOPE = 0.2
BN_EPS = 1e-5
LANES = 128
# v7x: 64 MiB physical VMEM (32 MiB scoped default).  32 MiB is safe on every
# generation and far above what these tiles need (~3 MiB).
VMEM_LIMIT_BYTES = 32 * 1024 * 1024


def _leaky_relu(x):
    return jnp.where(x > 0, x, LEAKY_SLOPE * x)


def _layer1(a_ref, b_ref, w1a_ref, w1b_ref, b1_ref):
    """cat(a, b) @ W1 + b1 -> LeakyReLU on lane-packed activations.

    cat(a, b) @ W1 == a @ W1[:D] + b @ W1[D:]  (no in-kernel lane concat).
    MXU operands are bf16; accumulation and element-wise math stay f32.
    """
    a = a_ref[...].astype(jnp.bfloat16)
    b = b_ref[...].astype(jnp.bfloat16)
    h = (jnp.dot(a, w1a_ref[...], preferred_element_type=jnp.float32)
         + jnp.dot(b, w1b_ref[...], preferred_element_type=jnp.float32)
         + b1_ref[...])
    return _leaky_relu(h)                       # f32, (rows, G*L)


def _bn_affine_and_tail(h, s, t, w2_ref, b2_ref, w3_ref, b3_ref, out_ref):
    """Folded BatchNorm FMA, Linear -> LeakyReLU, Linear, lane-dense store."""
    h = h * s + t
    h2 = jnp.dot(h.astype(jnp.bfloat16), w2_ref[...],
                 preferred_element_type=jnp.float32) + b2_ref[...]
    h2 = _leaky_relu(h2)
    out = jnp.dot(h2.astype(jnp.bfloat16), w3_ref[...],
                  preferred_element_type=jnp.float32) + b3_ref[...]
    out_ref[...] = out.astype(out_ref.dtype)


def _column_sums(h):
    """Per-lane sum and sum-of-squares via a ones-row matmul (MXU, f32 acc)."""
    ones = jnp.ones((1, h.shape[0]), jnp.float32)
    col_sum = jnp.dot(ones, h, preferred_element_type=jnp.float32)
    col_sq = jnp.dot(ones, h * h, preferred_element_type=jnp.float32)
    return col_sum, col_sq


def fused_setop_kernel(a_ref, b_ref, w1a_ref, w1b_ref, b1_ref,
                       gamma_ref, beta_ref, w2_ref, b2_ref, w3_ref, b3_ref,
                       out_ref, *, inv_n, group_width, lane_width):
    """Whole (packed) batch in one grid step: exact in-kernel batch stats."""
    h = _layer1(a_ref, b_ref, w1a_ref, w1b_ref, b1_ref)

    # Per-lane column sums on the MXU, then a log2(G)-step roll tree (XLU)
    # all-reduces the G lane-groups so mean/var arrive pre-tiled to (1, G*L).
    col_sum, col_sq = _column_sums(h)
    shift = group_width
    while shift < lane_width:
        col_sum = col_sum + pltpu.roll(col_sum, shift, axis=1)
        col_sq = col_sq + pltpu.roll(col_sq, shift, axis=1)
        shift *= 2

    mean = col_sum * inv_n
    var = jnp.maximum(col_sq * inv_n - mean * mean, 0.0)   # cancellation guard
    s = gamma_ref[...] * lax.rsqrt(var + BN_EPS)
    t = beta_ref[...] - mean * s
    _bn_affine_and_tail(h, s, t, w2_ref, b2_ref, w3_ref, b3_ref, out_ref)


def stats_kernel(a_ref, b_ref, w1a_ref, w1b_ref, b1_ref, sum_ref, sq_ref):
    """Pass 1 (tiled path): layer1 + LeakyReLU, per-tile partial BN sums."""
    h = _layer1(a_ref, b_ref, w1a_ref, w1b_ref, b1_ref)
    col_sum, col_sq = _column_sums(h)
    sum_ref[0] = col_sum
    sq_ref[0] = col_sq


def apply_kernel(a_ref, b_ref, w1a_ref, w1b_ref, b1_ref, s_ref, t_ref,
                 w2_ref, b2_ref, w3_ref, b3_ref, out_ref):
    """Pass 2 (tiled path): recompute layer1, apply folded BN + layers 2-3."""
    h = _layer1(a_ref, b_ref, w1a_ref, w1b_ref, b1_ref)
    _bn_affine_and_tail(h, s_ref[...], t_ref[...],
                        w2_ref, b2_ref, w3_ref, b3_ref, out_ref)


def _pick_tile(n_rows, target):
    """Largest multiple-of-8 tile <= target that divides n_rows (else full)."""
    if n_rows <= target:
        return n_rows
    for t in range(target - target % 8, 0, -8):
        if n_rows % t == 0:
            return t
    # TODO(synk): no multiple-of-8 divisor <= target; fall back to one block.
    return n_rows


def setop_block_forward(a, b, params, *, max_fused_rows=1024, tile_rows=512):
    """SetOpBlock_v3 forward (training-mode BatchNorm).  a, b: (B, Din) f32."""
    w1, b1, gamma, beta, w2, b2, w3, b3 = params
    B, Din = a.shape
    L = w2.shape[0]
    Dout = w3.shape[1]

    # ---- wrapper-side lane packing (free, row-major reshapes) ---------------
    assert LANES % Din == 0, "TODO(synk): Din must divide 128 for lane packing"
    G = LANES // Din                        # original rows per packed row (8)
    assert B % G == 0, "TODO(synk): pad/mask path for B not a multiple of 8"
    Bp = B // G                             # packed batch rows
    La = G * L                              # packed latent width  (256 lanes)
    Da = G * Dout                           # packed output width  (128 lanes)

    a_p = a.reshape(Bp, LANES)
    b_p = b.reshape(Bp, LANES)

    # Block-diagonal weight replicas (kron(I_G, W)); bf16 only at the MXU.
    eye = jnp.eye(G, dtype=jnp.float32)
    w1a_bd = jnp.kron(eye, w1[:Din]).astype(jnp.bfloat16)    # (128, La)
    w1b_bd = jnp.kron(eye, w1[Din:]).astype(jnp.bfloat16)    # (128, La)
    w2_bd = jnp.kron(eye, w2).astype(jnp.bfloat16)           # (La, La)
    w3_bd = jnp.kron(eye, w3).astype(jnp.bfloat16)           # (La, Da)
    b1_t = jnp.tile(b1, G).reshape(1, La)
    b2_t = jnp.tile(b2, G).reshape(1, La)
    b3_t = jnp.tile(b3, G).reshape(1, Da)

    def const(shape):
        return pl.BlockSpec(shape, lambda i: (0,) * len(shape))

    def row(shape):
        return pl.BlockSpec(shape, lambda i: (i,) + (0,) * (len(shape) - 1))

    def cparams(sem):
        return pltpu.CompilerParams(dimension_semantics=sem,
                                    vmem_limit_bytes=VMEM_LIMIT_BYTES)

    weight_specs = [const((G * Din, La)), const((G * Din, La)), const((1, La))]
    tail_specs = [const((La, La)), const((1, La)), const((La, Da)), const((1, Da))]

    if Bp <= max_fused_rows:
        # Small/medium batch: one launch, exact in-kernel batch statistics.
        kernel = functools.partial(fused_setop_kernel, inv_n=1.0 / B,
                                   group_width=L, lane_width=La)
        gamma_t = jnp.tile(gamma, G).reshape(1, La)
        beta_t = jnp.tile(beta, G).reshape(1, La)
        out_p = pl.pallas_call(
            kernel,
            out_shape=jax.ShapeDtypeStruct((Bp, Da), jnp.float32),
            grid=(1,),
            in_specs=[const((Bp, LANES)), const((Bp, LANES))] + weight_specs
                     + [const((1, La)), const((1, La))] + tail_specs,
            out_specs=const((Bp, Da)),
            compiler_params=cparams(("arbitrary",)),
        )(a_p, b_p, w1a_bd, w1b_bd, b1_t, gamma_t, beta_t, w2_bd, b2_t, w3_bd, b3_t)
    else:
        # Large batch: batch-tiled two-pass BatchNorm (pipelined + megacore).
        TB = _pick_tile(Bp, tile_rows)
        nt = Bp // TB

        part_sum, part_sq = pl.pallas_call(
            stats_kernel,
            out_shape=(jax.ShapeDtypeStruct((nt, 1, La), jnp.float32),
                       jax.ShapeDtypeStruct((nt, 1, La), jnp.float32)),
            grid=(nt,),
            in_specs=[row((TB, LANES)), row((TB, LANES))] + weight_specs,
            out_specs=(row((1, 1, La)), row((1, 1, La))),
            compiler_params=cparams(("parallel",)),
        )(a_p, b_p, w1a_bd, w1b_bd, b1_t)

        # Tiny JAX glue: fold batch stats into a per-feature FMA (s, t).
        tot = part_sum.sum(axis=(0, 1)).reshape(G, L).sum(axis=0)
        tot2 = part_sq.sum(axis=(0, 1)).reshape(G, L).sum(axis=0)
        mean = tot / B
        var = jnp.maximum(tot2 / B - mean * mean, 0.0)
        s = gamma * lax.rsqrt(var + BN_EPS)
        t = beta - mean * s
        s_t = jnp.tile(s, G).reshape(1, La)
        t_t = jnp.tile(t, G).reshape(1, La)

        out_p = pl.pallas_call(
            apply_kernel,
            out_shape=jax.ShapeDtypeStruct((Bp, Da), jnp.float32),
            grid=(nt,),
            in_specs=[row((TB, LANES)), row((TB, LANES))] + weight_specs
                     + [const((1, La)), const((1, La))] + tail_specs,
            out_specs=row((TB, Da)),
            compiler_params=cparams(("parallel",)),
        )(a_p, b_p, w1a_bd, w1b_bd, b1_t, s_t, t_t, w2_bd, b2_t, w3_bd, b3_t)

    return out_p.reshape(B, Dout)


def init_params(key, input_dim, latent_dim):
    """PyTorch-style init; weights in (in, out) layout, everything f32."""
    output_dim = input_dim
    ks = jax.random.split(key, 8)
    s1 = 1.0 / jnp.sqrt(2.0 * input_dim)
    s2 = 1.0 / jnp.sqrt(float(latent_dim))
    w1 = jax.random.uniform(ks[0], (2 * input_dim, latent_dim), jnp.float32, -s1, s1)
    b1 = jax.random.uniform(ks[1], (latent_dim,), jnp.float32, -s1, s1)
    gamma = 1.0 + 0.1 * jax.random.normal(ks[2], (latent_dim,), jnp.float32)
    beta = 0.1 * jax.random.normal(ks[3], (latent_dim,), jnp.float32)
    w2 = jax.random.uniform(ks[4], (latent_dim, latent_dim), jnp.float32, -s2, s2)
    b2 = jax.random.uniform(ks[5], (latent_dim,), jnp.float32, -s2, s2)
    w3 = jax.random.uniform(ks[6], (latent_dim, output_dim), jnp.float32, -s2, s2)
    b3 = jax.random.uniform(ks[7], (output_dim,), jnp.float32, -s2, s2)
    return (w1, b1, gamma, beta, w2, b2, w3, b3)


def reference_forward_mxu(a, b, params):
    """Matches kernel numerics: bf16 MXU operands, f32 accumulation,
    one-pass (E[x^2] - E[x]^2) batch statistics."""
    w1, b1, gamma, beta, w2, b2, w3, b3 = params
    ab = jnp.concatenate([a, b], axis=1).astype(jnp.bfloat16)
    h = jnp.dot(ab, w1.astype(jnp.bfloat16), preferred_element_type=jnp.float32) + b1
    h = jnp.where(h > 0, h, LEAKY_SLOPE * h)
    mean = jnp.mean(h, axis=0)
    var = jnp.maximum(jnp.mean(h * h, axis=0) - mean * mean, 0.0)
    s = gamma * lax.rsqrt(var + BN_EPS)
    t = beta - mean * s
    h = h * s + t
    h2 = jnp.dot(h.astype(jnp.bfloat16), w2.astype(jnp.bfloat16),
                 preferred_element_type=jnp.float32) + b2
    h2 = jnp.where(h2 > 0, h2, LEAKY_SLOPE * h2)
    return jnp.dot(h2.astype(jnp.bfloat16), w3.astype(jnp.bfloat16),
                   preferred_element_type=jnp.float32) + b3


def reference_forward_f32(a, b, params):
    """Pure-f32 PyTorch-semantics forward (training-mode BatchNorm)."""
    w1, b1, gamma, beta, w2, b2, w3, b3 = params
    ab = jnp.concatenate([a, b], axis=1)
    h = ab @ w1 + b1
    h = jnp.where(h > 0, h, LEAKY_SLOPE * h)
    mean = jnp.mean(h, axis=0)
    var = jnp.mean((h - mean) ** 2, axis=0)
    h = (h - mean) / jnp.sqrt(var + BN_EPS) * gamma + beta
    h2 = h @ w2 + b2
    h2 = jnp.where(h2 > 0, h2, LEAKY_SLOPE * h2)
    return h2 @ w3 + b3


if __name__ == "__main__":
    key = jax.random.PRNGKey(0)
    k_a, k_b, k_p, k_a2, k_b2 = jax.random.split(key, 5)

    # input_dim=16, latent_dim=32, output_dim == input_dim == 16.
    batch, input_dim, latent_dim = 128, 16, 32

    a = jax.random.normal(k_a, (batch, input_dim), jnp.float32)
    b = jax.random.normal(k_b, (batch, input_dim), jnp.float32)
    params = init_params(k_p, input_dim, latent_dim)

    # Small-batch path: single fused launch with in-kernel batch statistics.
    out = jax.block_until_ready(setop_block_forward(a, b, params))
    assert out.shape == (batch, input_dim)
    ref_mxu = reference_forward_mxu(a, b, params)
    ref_f32 = reference_forward_f32(a, b, params)
    assert jnp.allclose(out, ref_mxu, atol=2e-3, rtol=2e-3), \
        "fused path: mismatch vs bf16-matched reference"
    assert jnp.allclose(out, ref_f32, atol=5e-2, rtol=5e-2), \
        "fused path: mismatch vs full-f32 reference"

    # Exercise the large-batch tiled two-pass path (forced via thresholds).
    batch2 = 1024
    a2 = jax.random.normal(k_a2, (batch2, input_dim), jnp.float32)
    b2 = jax.random.normal(k_b2, (batch2, input_dim), jnp.float32)
    out2 = jax.block_until_ready(
        setop_block_forward(a2, b2, params, max_fused_rows=0, tile_rows=32))
    assert out2.shape == (batch2, input_dim)
    ref2 = reference_forward_mxu(a2, b2, params)
    assert jnp.allclose(out2, ref2, atol=2e-3, rtol=2e-3), \
        "tiled path: mismatch vs bf16-matched reference"

    print("KERNEL_OK")
</pallas_src>

<mosaic_0001>
module attributes {stable_mosaic.version = 11 : i64} {
  func.func @fused_setop_kernel(%arg0: i32, %arg1: memref<16x128xf32, #tpu.memory_space<vmem>>, %arg2: memref<16x128xf32, #tpu.memory_space<vmem>>, %arg3: memref<128x256xbf16, #tpu.memory_space<vmem>>, %arg4: memref<128x256xbf16, #tpu.memory_space<vmem>>, %arg5: memref<1x256xf32, #tpu.memory_space<vmem>>, %arg6: memref<1x256xf32, #tpu.memory_space<vmem>>, %arg7: memref<1x256xf32, #tpu.memory_space<vmem>>, %arg8: memref<256x256xbf16, #tpu.memory_space<vmem>>, %arg9: memref<1x256xf32, #tpu.memory_space<vmem>>, %arg10: memref<256x128xbf16, #tpu.memory_space<vmem>>, %arg11: memref<1x128xf32, #tpu.memory_space<vmem>>, %arg12: memref<16x128xf32, #tpu.memory_space<vmem>>) attributes {dimension_semantics = [#tpu.dimension_semantics<arbitrary>], iteration_bounds = array<i64: 1>, scalar_prefetch = 0 : i64, scratch_operands = 0 : i64, tpu.core_type = #tpu.core_type<tc>, window_params = [{pipeline_mode = #tpu.pipeline_mode<synchronous>, transform_indices = @transform_0, window_bounds = array<i64: 16, 128>}, {pipeline_mode = #tpu.pipeline_mode<synchronous>, transform_indices = @transform_1, window_bounds = array<i64: 16, 128>}, {pipeline_mode = #tpu.pipeline_mode<synchronous>, transform_indices = @transform_2, window_bounds = array<i64: 128, 256>}, {pipeline_mode = #tpu.pipeline_mode<synchronous>, transform_indices = @transform_3, window_bounds = array<i64: 128, 256>}, {pipeline_mode = #tpu.pipeline_mode<synchronous>, transform_indices = @transform_4, window_bounds = array<i64: 1, 256>}, {pipeline_mode = #tpu.pipeline_mode<synchronous>, transform_indices = @transform_5, window_bounds = array<i64: 1, 256>}, {pipeline_mode = #tpu.pipeline_mode<synchronous>, transform_indices = @transform_6, window_bounds = array<i64: 1, 256>}, {pipeline_mode = #tpu.pipeline_mode<synchronous>, transform_indices = @transform_7, window_bounds = array<i64: 256, 256>}, {pipeline_mode = #tpu.pipeline_mode<synchronous>, transform_indices = @transform_8, window_bounds = array<i64: 1, 256>}, {pipeline_mode = #tpu.pipeline_mode<synchronous>, transform_indices = @transform_9, window_bounds = array<i64: 256, 128>}, {pipeline_mode = #tpu.pipeline_mode<synchronous>, transform_indices = @transform_10, window_bounds = array<i64: 1, 128>}, {pipeline_mode = #tpu.pipeline_mode<synchronous>, transform_indices = @transform_11, window_bounds = array<i64: 16, 128>}]} {
    %c0 = arith.constant 0 : index
    %c0_0 = arith.constant 0 : index
    %0 = vector.load %arg1[%c0, %c0_0] : memref<16x128xf32, #tpu.memory_space<vmem>>, vector<16x128xf32>
    %1 = arith.truncf %0 : vector<16x128xf32> to vector<16x128xbf16>
    %c0_1 = arith.constant 0 : index
    %c0_2 = arith.constant 0 : index
    %2 = vector.load %arg2[%c0_1, %c0_2] : memref<16x128xf32, #tpu.memory_space<vmem>>, vector<16x128xf32>
    %3 = arith.truncf %2 : vector<16x128xf32> to vector<16x128xbf16>
    %c0_3 = arith.constant 0 : index
    %c0_4 = arith.constant 0 : index
    %4 = vector.load %arg3[%c0_3, %c0_4] : memref<128x256xbf16, #tpu.memory_space<vmem>>, vector<128x256xbf16>
    %cst = arith.constant dense<0.000000e+00> : vector<16x256xf32>
    %5 = tpu.matmul %1, %4, %cst {dimension_numbers = #tpu.dot_dimension_numbers<[1], [0], [0], [1], [0, 0, 1, 1], [], []>} : vector<16x128xbf16>, vector<128x256xbf16>, vector<16x256xf32> -> vector<16x256xf32>
    %c0_5 = arith.constant 0 : index
    %c0_6 = arith.constant 0 : index
    %6 = vector.load %arg4[%c0_5, %c0_6] : memref<128x256xbf16, #tpu.memory_space<vmem>>, vector<128x256xbf16>
    %cst_7 = arith.constant dense<0.000000e+00> : vector<16x256xf32>
    %7 = tpu.matmul %3, %6, %cst_7 {dimension_numbers = #tpu.dot_dimension_numbers<[1], [0], [0], [1], [0, 0, 1, 1], [], []>} : vector<16x128xbf16>, vector<128x256xbf16>, vector<16x256xf32> -> vector<16x256xf32>
    %8 = arith.addf %5, %7 : vector<16x256xf32>
    %c0_8 = arith.constant 0 : index
    %c0_9 = arith.constant 0 : index
    %9 = vector.load %arg5[%c0_8, %c0_9] : memref<1x256xf32, #tpu.memory_space<vmem>>, vector<1x256xf32>
    %10 = vector.broadcast %9 : vector<1x256xf32> to vector<16x256xf32>
    %11 = arith.addf %8, %10 : vector<16x256xf32>
    %cst_10 = arith.constant 0.000000e+00 : f32
    %12 = vector.broadcast %cst_10 : f32 to vector<16x256xf32>
    %13 = arith.cmpf ogt, %11, %12 : vector<16x256xf32>
    %cst_11 = arith.constant 2.000000e-01 : f32
    %14 = vector.broadcast %cst_11 : f32 to vector<16x256xf32>
    %15 = arith.mulf %14, %11 : vector<16x256xf32>
    %16 = arith.select %13, %11, %15 : vector<16x256xi1>, vector<16x256xf32>
    %cst_12 = arith.constant 1.000000e+00 : f32
    %17 = vector.broadcast %cst_12 : f32 to vector<1x16xf32>
    %cst_13 = arith.constant dense<0.000000e+00> : vector<1x256xf32>
    %18 = tpu.matmul %17, %16, %cst_13 {dimension_numbers = #tpu.dot_dimension_numbers<[1], [0], [0], [1], [0, 0, 1, 1], [], []>} : vector<1x16xf32>, vector<16x256xf32>, vector<1x256xf32> -> vector<1x256xf32>
    %19 = arith.mulf %16, %16 : vector<16x256xf32>
    %cst_14 = arith.constant dense<0.000000e+00> : vector<1x256xf32>
    %20 = tpu.matmul %17, %19, %cst_14 {dimension_numbers = #tpu.dot_dimension_numbers<[1], [0], [0], [1], [0, 0, 1, 1], [], []>} : vector<1x16xf32>, vector<16x256xf32>, vector<1x256xf32> -> vector<1x256xf32>
    %c32_i32 = arith.constant 32 : i32
    %21 = tpu.dynamic_rotate %18 by %c32_i32 dim 1 : vector<1x256xf32>, i32 -> vector<1x256xf32>
    %22 = arith.addf %18, %21 : vector<1x256xf32>
    %c32_i32_15 = arith.constant 32 : i32
    %23 = tpu.dynamic_rotate %20 by %c32_i32_15 dim 1 : vector<1x256xf32>, i32 -> vector<1x256xf32>
    %24 = arith.addf %20, %23 : vector<1x256xf32>
    %c64_i32 = arith.constant 64 : i32
    %25 = tpu.dynamic_rotate %22 by %c64_i32 dim 1 : vector<1x256xf32>, i32 -> vector<1x256xf32>
    %26 = arith.addf %22, %25 : vector<1x256xf32>
    %c64_i32_16 = arith.constant 64 : i32
    %27 = tpu.dynamic_rotate %24 by %c64_i32_16 dim 1 : vector<1x256xf32>, i32 -> vector<1x256xf32>
    %28 = arith.addf %24, %27 : vector<1x256xf32>
    %c128_i32 = arith.constant 128 : i32
    %29 = tpu.dynamic_rotate %26 by %c128_i32 dim 1 : vector<1x256xf32>, i32 -> vector<1x256xf32>
    %30 = arith.addf %26, %29 : vector<1x256xf32>
    %c128_i32_17 = arith.constant 128 : i32
    %31 = tpu.dynamic_rotate %28 by %c128_i32_17 dim 1 : vector<1x256xf32>, i32 -> vector<1x256xf32>
    %32 = arith.addf %28, %31 : vector<1x256xf32>
    %cst_18 = arith.constant 7.812500e-03 : f32
    %33 = vector.broadcast %cst_18 : f32 to vector<1x256xf32>
    %34 = arith.mulf %30, %33 : vector<1x256xf32>
    %cst_19 = arith.constant 7.812500e-03 : f32
    %35 = vector.broadcast %cst_19 : f32 to vector<1x256xf32>
    %36 = arith.mulf %32, %35 : vector<1x256xf32>
    %37 = arith.mulf %34, %34 : vector<1x256xf32>
    %38 = arith.subf %36, %37 : vector<1x256xf32>
    %cst_20 = arith.constant 0.000000e+00 : f32
    %39 = vector.broadcast %cst_20 : f32 to vector<1x256xf32>
    %40 = arith.maximumf %38, %39 : vector<1x256xf32>
    %c0_21 = arith.constant 0 : index
    %c0_22 = arith.constant 0 : index
    %41 = vector.load %arg6[%c0_21, %c0_22] : memref<1x256xf32, #tpu.memory_space<vmem>>, vector<1x256xf32>
    %cst_23 = arith.constant 9.99999974E-6 : f32
    %42 = vector.broadcast %cst_23 : f32 to vector<1x256xf32>
    %43 = arith.addf %40, %42 : vector<1x256xf32>
    %44 = math.rsqrt %43 : vector<1x256xf32>
    %45 = arith.mulf %41, %44 : vector<1x256xf32>
    %c0_24 = arith.constant 0 : index
    %c0_25 = arith.constant 0 : index
    %46 = vector.load %arg7[%c0_24, %c0_25] : memref<1x256xf32, #tpu.memory_space<vmem>>, vector<1x256xf32>
    %47 = arith.mulf %34, %45 : vector<1x256xf32>
    %48 = arith.subf %46, %47 : vector<1x256xf32>
    %49 = vector.broadcast %45 : vector<1x256xf32> to vector<16x256xf32>
    %50 = arith.mulf %16, %49 : vector<16x256xf32>
    %51 = vector.broadcast %48 : vector<1x256xf32> to vector<16x256xf32>
    %52 = arith.addf %50, %51 : vector<16x256xf32>
    %53 = arith.truncf %52 : vector<16x256xf32> to vector<16x256xbf16>
    %c0_26 = arith.constant 0 : index
    %c0_27 = arith.constant 0 : index
    %54 = vector.load %arg8[%c0_26, %c0_27] : memref<256x256xbf16, #tpu.memory_space<vmem>>, vector<256x256xbf16>
    %cst_28 = arith.constant dense<0.000000e+00> : vector<16x256xf32>
    %55 = tpu.matmul %53, %54, %cst_28 {dimension_numbers = #tpu.dot_dimension_numbers<[1], [0], [0], [1], [0, 0, 1, 1], [], []>} : vector<16x256xbf16>, vector<256x256xbf16>, vector<16x256xf32> -> vector<16x256xf32>
    %c0_29 = arith.constant 0 : index
    %c0_30 = arith.constant 0 : index
    %56 = vector.load %arg9[%c0_29, %c0_30] : memref<1x256xf32, #tpu.memory_space<vmem>>, vector<1x256xf32>
    %57 = vector.broadcast %56 : vector<1x256xf32> to vector<16x256xf32>
    %58 = arith.addf %55, %57 : vector<16x256xf32>
    %cst_31 = arith.constant 0.000000e+00 : f32
    %59 = vector.broadcast %cst_31 : f32 to vector<16x256xf32>
    %60 = arith.cmpf ogt, %58, %59 : vector<16x256xf32>
    %cst_32 = arith.constant 2.000000e-01 : f32
    %61 = vector.broadcast %cst_32 : f32 to vector<16x256xf32>
    %62 = arith.mulf %61, %58 : vector<16x256xf32>
    %63 = arith.select %60, %58, %62 : vector<16x256xi1>, vector<16x256xf32>
    %64 = arith.truncf %63 : vector<16x256xf32> to vector<16x256xbf16>
    %c0_33 = arith.constant 0 : index
    %c0_34 = arith.constant 0 : index
    %65 = vector.load %arg10[%c0_33, %c0_34] : memref<256x128xbf16, #tpu.memory_space<vmem>>, vector<256x128xbf16>
    %cst_35 = arith.constant dense<0.000000e+00> : vector<16x128xf32>
    %66 = tpu.matmul %64, %65, %cst_35 {dimension_numbers = #tpu.dot_dimension_numbers<[1], [0], [0], [1], [0, 0, 1, 1], [], []>} : vector<16x256xbf16>, vector<256x128xbf16>, vector<16x128xf32> -> vector<16x128xf32>
    %c0_36 = arith.constant 0 : index
    %c0_37 = arith.constant 0 : index
    %67 = vector.load %arg11[%c0_36, %c0_37] : memref<1x128xf32, #tpu.memory_space<vmem>>, vector<1x128xf32>
    %68 = vector.broadcast %67 : vector<1x128xf32> to vector<16x128xf32>
    %69 = arith.addf %66, %68 : vector<16x128xf32>
    %c0_38 = arith.constant 0 : index
    %c0_39 = arith.constant 0 : index
    %70 = vector.load %arg12[%c0_38, %c0_39] : memref<16x128xf32, #tpu.memory_space<vmem>>, vector<16x128xf32>
    tpu.vector_store %arg12[%c0_38, %c0_39], %69 {strides = array<i32>} : memref<16x128xf32, #tpu.memory_space<vmem>>, vector<16x128xf32>,
    return
  }
  func.func @transform_0(%arg0: i32) -> (i32, i32) {
    %c0_i32 = arith.constant 0 : i32
    %c0_i32_0 = arith.constant 0 : i32
    %c0_i32_1 = arith.constant 0 : i32
    return %c0_i32, %c0_i32_0 : i32, i32
  }
  func.func @transform_1(%arg0: i32) -> (i32, i32) {
    %c0_i32 = arith.constant 0 : i32
    %c0_i32_0 = arith.constant 0 : i32
    %c0_i32_1 = arith.constant 0 : i32
    return %c0_i32, %c0_i32_0 : i32, i32
  }
  func.func @transform_2(%arg0: i32) -> (i32, i32) {
    %c0_i32 = arith.constant 0 : i32
    %c0_i32_0 = arith.constant 0 : i32
    %c0_i32_1 = arith.constant 0 : i32
    return %c0_i32, %c0_i32_0 : i32, i32
  }
  func.func @transform_3(%arg0: i32) -> (i32, i32) {
    %c0_i32 = arith.constant 0 : i32
    %c0_i32_0 = arith.constant 0 : i32
    %c0_i32_1 = arith.constant 0 : i32
    return %c0_i32, %c0_i32_0 : i32, i32
  }
  func.func @transform_4(%arg0: i32) -> (i32, i32) {
    %c0_i32 = arith.constant 0 : i32
    %c0_i32_0 = arith.constant 0 : i32
    %c0_i32_1 = arith.constant 0 : i32
    return %c0_i32, %c0_i32_0 : i32, i32
  }
  func.func @transform_5(%arg0: i32) -> (i32, i32) {
    %c0_i32 = arith.constant 0 : i32
    %c0_i32_0 = arith.constant 0 : i32
    %c0_i32_1 = arith.constant 0 : i32
    return %c0_i32, %c0_i32_0 : i32, i32
  }
  func.func @transform_6(%arg0: i32) -> (i32, i32) {
    %c0_i32 = arith.constant 0 : i32
    %c0_i32_0 = arith.constant 0 : i32
    %c0_i32_1 = arith.constant 0 : i32
    return %c0_i32, %c0_i32_0 : i32, i32
  }
  func.func @transform_7(%arg0: i32) -> (i32, i32) {
    %c0_i32 = arith.constant 0 : i32
    %c0_i32_0 = arith.constant 0 : i32
    %c0_i32_1 = arith.constant 0 : i32
    return %c0_i32, %c0_i32_0 : i32, i32
  }
  func.func @transform_8(%arg0: i32) -> (i32, i32) {
    %c0_i32 = arith.constant 0 : i32
    %c0_i32_0 = arith.constant 0 : i32
    %c0_i32_1 = arith.constant 0 : i32
    return %c0_i32, %c0_i32_0 : i32, i32
  }
  func.func @transform_9(%arg0: i32) -> (i32, i32) {
    %c0_i32 = arith.constant 0 : i32
    %c0_i32_0 = arith.constant 0 : i32
    %c0_i32_1 = arith.constant 0 : i32
    return %c0_i32, %c0_i32_0 : i32, i32
  }
  func.func @transform_10(%arg0: i32) -> (i32, i32) {
    %c0_i32 = arith.constant 0 : i32
    %c0_i32_0 = arith.constant 0 : i32
    %c0_i32_1 = arith.constant 0 : i32
    return %c0_i32, %c0_i32_0 : i32, i32
  }
  func.func @transform_11(%arg0: i32) -> (i32, i32) {
    %c0_i32 = arith.constant 0 : i32
    %c0_i32_0 = arith.constant 0 : i32
    %c0_i32_1 = arith.constant 0 : i32
    return %c0_i32, %c0_i32_0 : i32, i32
  }
}

</mosaic_0001>

<llo_original>
// kernel: tpu_custom_call.1
$region0: #{tpu_custom_call.1}
  #allocation0 [shape = 'u32[]', space=smem, size = 0x4, offset = 0x4, fixed_abs, tag = 'smem constant byte address 0x4 - core index']
  #allocation1 [shape = 'u32[144,128]{1,0:T(1,128)}', space=vmem, size = 0x12000, scoped, tag = 'internal scratch']
  %s0 = inlined_call_operand.hbm [shape: f32[16,128], index: 0, kind: input, shape index: {}]
  %s1 = inlined_call_operand.hbm [shape: f32[16,128], index: 1, kind: input, shape index: {}]
  %s2 = inlined_call_operand.hbm [shape: bf16[128,256], index: 2, kind: input, shape index: {}]
  %s3 = inlined_call_operand.hbm [shape: bf16[128,256], index: 3, kind: input, shape index: {}]
  %s4 = inlined_call_operand.vmem [shape: f32[1,256], index: 4, kind: input, shape index: {}]
  %s5 = inlined_call_operand.vmem [shape: f32[1,256], index: 5, kind: input, shape index: {}]
  %s6 = inlined_call_operand.vmem [shape: f32[1,256], index: 6, kind: input, shape index: {}]
  %s7 = inlined_call_operand.hbm [shape: bf16[256,256], index: 7, kind: input, shape index: {}]
  %s8 = inlined_call_operand.vmem [shape: f32[1,256], index: 8, kind: input, shape index: {}]
  %s9 = inlined_call_operand.hbm [shape: bf16[256,128], index: 9, kind: input, shape index: {}]
  %s10 = inlined_call_operand.vmem [shape: f32[1,128], index: 10, kind: input, shape index: {}]
  %s11 = inlined_call_operand.hbm [shape: f32[16,128], index: 11, kind: output, shape index: {}]
  %s12 = sld [smem:[#allocation0]]
  $region78: #{tpu_custom_call.1} parent=0
    _
  %s14 = ssub.s32 1, %s12
  %s15 = scalar_select 0, %s14, %s12
  $region1: #{tpu_custom_call.1} parent=0
    #allocation2 [shape = 'u8[8192]{0}', space=vmem, size = 0x2000, scoped, tag = 'input window, operand 0, single buffered']
    #allocation3 [shape = 's32[1]{0}', space=sflag, size = 0x4, scoped, tag = 'scoped memory for tpu_custom_call.1']
    #allocation4 [shape = 's32[1]{0}', space=sflag, size = 0x4, scoped, tag = 'scoped memory for tpu_custom_call.1']
    #allocation5 [shape = 'u8[8192]{0}', space=vmem, size = 0x2000, scoped, tag = 'input window, operand 1, single buffered']
    #allocation6 [shape = 's32[1]{0}', space=sflag, size = 0x4, scoped, tag = 'scoped memory for tpu_custom_call.1']
    #allocation7 [shape = 'u8[65536]{0}', space=vmem, size = 0x10000, scoped, tag = 'input window, operand 2, single buffered']
    #allocation8 [shape = 'u8[65536]{0}', space=vmem, size = 0x10000, scoped, tag = 'input window, operand 3, single buffered']
    #allocation9 [shape = 's32[1]{0}', space=sflag, size = 0x4, scoped, tag = 'scoped memory for tpu_custom_call.1']
    #allocation10 [shape = 'u8[131072]{0}', space=vmem, size = 0x20000, scoped, tag = 'input window, operand 7, single buffered']
    #allocation11 [shape = 'u8[65536]{0}', space=vmem, size = 0x10000, scoped, tag = 'input window, operand 9, single buffered']
    #allocation12 [shape = 's32[1]{0}', space=sflag, size = 0x4, scoped, tag = 'scoped memory for tpu_custom_call.1']
    #allocation13 [shape = 'u8[8192]{0}', space=vmem, size = 0x2000, scoped, tag = 'output window, operand 0, single buffered']
    %16 = vsyncpa [#allocation3], 0
    %17 = vsyncpa [#allocation6], 0
    %18 = vsyncpa [#allocation9], 0
    %19 = vsyncpa [#allocation12], 0
    %20 = vsyncpa [#allocation4], 0
    // Predicated region
    $region2: #{tpu_custom_call.1} parent=1 // pred_check
      _
    $region3: #{tpu_custom_call.1} parent=1 // pred_check_branch
      %22 = sbr.rel (0) target = $region5
    $region4: #{tpu_custom_call.1} parent=1 // pred_region
      %s24 = ssub.s32 256, 256
      %25 = vsyncadd [#allocation3], %s24
      %s26 = sshll.u32 [#allocation2], 4
      %s27 = int_to_ptr.vmem [resolvable:$true] %s26
      %32 = dma.hbm_to_vmem [thread:$0]  %s0, 256, %s27, [#allocation3], 128, 128, 8
    $region5: #{tpu_custom_call.1} parent=1 // pred_fallthru
      _
    // Predicated region
    $region6: #{tpu_custom_call.1} parent=1 // pred_check
      _
    $region7: #{tpu_custom_call.1} parent=1 // pred_check_branch
      %34 = sbr.rel (0) target = $region9
    $region8: #{tpu_custom_call.1} parent=1 // pred_region
      %s36 = ssub.s32 256, 256
      %37 = vsyncadd [#allocation6], %s36
      %s38 = sshll.u32 [#allocation5], 4
      %s39 = int_to_ptr.vmem [resolvable:$true] %s38
      %44 = dma.hbm_to_vmem [thread:$0]  %s1, 256, %s39, [#allocation6], 128, 128, 8
    $region9: #{tpu_custom_call.1} parent=1 // pred_fallthru
      _
    // Predicated region
    $region10: #{tpu_custom_call.1} parent=1 // pred_check
      _
    $region11: #{tpu_custom_call.1} parent=1 // pred_check_branch
      %46 = sbr.rel (0) target = $region13
    $region12: #{tpu_custom_call.1} parent=1 // pred_region
      %s48 = ssub.s32 2048, 2048
      %49 = vsyncadd [#allocation6], %s48
      %s50 = sshll.u32 [#allocation7], 4
      %s51 = int_to_ptr.vmem [resolvable:$true] %s50
      %56 = dma.hbm_to_vmem [thread:$0]  %s2, 2048, %s51, [#allocation6], 128, 128, 8
    $region13: #{tpu_custom_call.1} parent=1 // pred_fallthru
      _
    // Predicated region
    $region14: #{tpu_custom_call.1} parent=1 // pred_check
      _
    $region15: #{tpu_custom_call.1} parent=1 // pred_check_branch
      %58 = sbr.rel (0) target = $region17
    $region16: #{tpu_custom_call.1} parent=1 // pred_region
      %s60 = ssub.s32 2048, 2048
      %61 = vsyncadd [#allocation9], %s60
      %s62 = sshll.u32 [#allocation8], 4
      %s63 = int_to_ptr.vmem [resolvable:$true] %s62
      %68 = dma.hbm_to_vmem [thread:$0]  %s3, 2048, %s63, [#allocation9], 128, 128, 8
    $region17: #{tpu_custom_call.1} parent=1 // pred_fallthru
      _
    // Predicated region
    $region18: #{tpu_custom_call.1} parent=1 // pred_check
      _
    $region19: #{tpu_custom_call.1} parent=1 // pred_check_branch
      %70 = sbr.rel (0) target = $region21
    $region20: #{tpu_custom_call.1} parent=1 // pred_region
      _
    $region21: #{tpu_custom_call.1} parent=1 // pred_fallthru
      _
    // Predicated region
    $region22: #{tpu_custom_call.1} parent=1 // pred_check
      _
    $region23: #{tpu_custom_call.1} parent=1 // pred_check_branch
      %72 = sbr.rel (0) target = $region25
    $region24: #{tpu_custom_call.1} parent=1 // pred_region
      _
    $region25: #{tpu_custom_call.1} parent=1 // pred_fallthru
      _
    // Predicated region
    $region26: #{tpu_custom_call.1} parent=1 // pred_check
      _
    $region27: #{tpu_custom_call.1} parent=1 // pred_check_branch
      %74 = sbr.rel (0) target = $region29
    $region28: #{tpu_custom_call.1} parent=1 // pred_region
      _
    $region29: #{tpu_custom_call.1} parent=1 // pred_fallthru
      _
    // Predicated region
    $region30: #{tpu_custom_call.1} parent=1 // pred_check
      _
    $region31: #{tpu_custom_call.1} parent=1 // pred_check_branch
      %76 = sbr.rel (0) target = $region33
    $region32: #{tpu_custom_call.1} parent=1 // pred_region
      %s78 = ssub.s32 4096, 4096
      %79 = vsyncadd [#allocation9], %s78
      %s80 = sshll.u32 [#allocation10], 4
      %s81 = int_to_ptr.vmem [resolvable:$true] %s80
      %86 = dma.hbm_to_vmem [thread:$0]  %s7, 4096, %s81, [#allocation9], 128, 128, 8
    $region33: #{tpu_custom_call.1} parent=1 // pred_fallthru
      _
    // Predicated region
    $region34: #{tpu_custom_call.1} parent=1 // pred_check
      _
    $region35: #{tpu_custom_call.1} parent=1 // pred_check_branch
      %88 = sbr.rel (0) target = $region37
    $region36: #{tpu_custom_call.1} parent=1 // pred_region
      _
    $region37: #{tpu_custom_call.1} parent=1 // pred_fallthru
      _
    // Predicated region
    $region38: #{tpu_custom_call.1} parent=1 // pred_check
      _
    $region39: #{tpu_custom_call.1} parent=1 // pred_check_branch
      %90 = sbr.rel (0) target = $region41
    $region40: #{tpu_custom_call.1} parent=1 // pred_region
      %s92 = ssub.s32 2048, 2048
      %93 = vsyncadd [#allocation12], %s92
      %s94 = sshll.u32 [#allocation11], 4
      %s95 = int_to_ptr.vmem [resolvable:$true] %s94
      %100 = dma.hbm_to_vmem [thread:$0]  %s9, 2048, %s95, [#allocation12], 64, 64, 4
    $region41: #{tpu_custom_call.1} parent=1 // pred_fallthru
      _
    // Predicated region
    $region42: #{tpu_custom_call.1} parent=1 // pred_check
      _
    $region43: #{tpu_custom_call.1} parent=1 // pred_check_branch
      %102 = sbr.rel (0) target = $region45
    $region44: #{tpu_custom_call.1} parent=1 // pred_region
      _
    $region45: #{tpu_custom_call.1} parent=1 // pred_fallthru
      _
    // Predicated region
    $region46: #{tpu_custom_call.1} parent=1 // pred_check
      _
    $region47: #{tpu_custom_call.1} parent=1 // pred_check_branch
      %104 = sbr.rel (0) target = $region49
    $region48: #{tpu_custom_call.1} parent=1 // pred_region
      %105 = dma.done [#allocation3], 256
    $region49: #{tpu_custom_call.1} parent=1 // pred_fallthru
      _
    // Predicated region
    $region50: #{tpu_custom_call.1} parent=1 // pred_check
      _
    $region51: #{tpu_custom_call.1} parent=1 // pred_check_branch
      %107 = sbr.rel (0) target = $region53
    $region52: #{tpu_custom_call.1} parent=1 // pred_region
      %108 = dma.done [#allocation6], 256
    $region53: #{tpu_custom_call.1} parent=1 // pred_fallthru
      _
    // Predicated region
    $region54: #{tpu_custom_call.1} parent=1 // pred_check
      _
    $region55: #{tpu_custom_call.1} parent=1 // pred_check_branch
      %110 = sbr.rel (0) target = $region57
    $region56: #{tpu_custom_call.1} parent=1 // pred_region
      %111 = dma.done [#allocation6], 2048
    $region57: #{tpu_custom_call.1} parent=1 // pred_fallthru
      _
    // Predicated region
    $region58: #{tpu_custom_call.1} parent=1 // pred_check
      _
    $region59: #{tpu_custom_call.1} parent=1 // pred_check_branch
      %113 = sbr.rel (0) target = $region61
    $region60: #{tpu_custom_call.1} parent=1 // pred_region
      %114 = dma.done [#allocation9], 2048
    $region61: #{tpu_custom_call.1} parent=1 // pred_fallthru
      _
    // Predicated region
    $region62: #{tpu_custom_call.1} parent=1 // pred_check
      _
    $region63: #{tpu_custom_call.1} parent=1 // pred_check_branch
      %116 = sbr.rel (0) target = $region65
    $region64: #{tpu_custom_call.1} parent=1 // pred_region
      %117 = dma.done [#allocation9], 4096
    $region65: #{tpu_custom_call.1} parent=1 // pred_fallthru
      _
    // Predicated region
    $region66: #{tpu_custom_call.1} parent=1 // pred_check
      _
    $region67: #{tpu_custom_call.1} parent=1 // pred_check_branch
      %119 = sbr.rel (0) target = $region69
    $region68: #{tpu_custom_call.1} parent=1 // pred_region
      %120 = dma.done [#allocation12], 2048
    $region69: #{tpu_custom_call.1} parent=1 // pred_fallthru
      _
    %v122 = vld [vmem:[#allocation2] sm:$0xff]
    %v123 = vld [vmem:[#allocation2 + $0x8] sm:$0xff]
    %v124 = vpack.c.bf16 %v123, %v122
    %v125 = vld [vmem:[#allocation5] sm:$0xff]
    %v126 = vld [vmem:[#allocation5 + $0x8] sm:$0xff]
    %v127 = vpack.c.bf16 %v126, %v125
    %v128 = vld [vmem:[#allocation7] sm:$0xff]
    %v129 = vld [vmem:[#allocation7 + $0x8] sm:$0xff]
    %v130 = vld [vmem:[#allocation7 + $0x10] sm:$0xff]
    %v131 = vld [vmem:[#allocation7 + $0x18] sm:$0xff]
    %v132 = vld [vmem:[#allocation7 + $0x20] sm:$0xff]
    %v133 = vld [vmem:[#allocation7 + $0x28] sm:$0xff]
    %v134 = vld [vmem:[#allocation7 + $0x30] sm:$0xff]
    %v135 = vld [vmem:[#allocation7 + $0x38] sm:$0xff]
    %v136 = vld [vmem:[#allocation7 + $0x40] sm:$0xff]
    %v137 = vld [vmem:[#allocation7 + $0x48] sm:$0xff]
    %v138 = vld [vmem:[#allocation7 + $0x50] sm:$0xff]
    %v139 = vld [vmem:[#allocation7 + $0x58] sm:$0xff]
    %v140 = vld [vmem:[#allocation7 + $0x60] sm:$0xff]
    %v141 = vld [vmem:[#allocation7 + $0x68] sm:$0xff]
    %v142 = vld [vmem:[#allocation7 + $0x70] sm:$0xff]
    %v143 = vld [vmem:[#allocation7 + $0x78] sm:$0xff]
    %v144 = vld [vmem:[#allocation8] sm:$0xff]
    %v145 = vld [vmem:[#allocation8 + $0x8] sm:$0xff]
    %v146 = vld [vmem:[#allocation8 + $0x10] sm:$0xff]
    %v147 = vld [vmem:[#allocation8 + $0x18] sm:$0xff]
    %v148 = vld [vmem:[#allocation8 + $0x20] sm:$0xff]
    %v149 = vld [vmem:[#allocation8 + $0x28] sm:$0xff]
    %v150 = vld [vmem:[#allocation8 + $0x30] sm:$0xff]
    %v151 = vld [vmem:[#allocation8 + $0x38] sm:$0xff]
    %v152 = vld [vmem:[#allocation8 + $0x40] sm:$0xff]
    %v153 = vld [vmem:[#allocation8 + $0x48] sm:$0xff]
    %v154 = vld [vmem:[#allocation8 + $0x50] sm:$0xff]
    %v155 = vld [vmem:[#allocation8 + $0x58] sm:$0xff]
    %v156 = vld [vmem:[#allocation8 + $0x60] sm:$0xff]
    %v157 = vld [vmem:[#allocation8 + $0x68] sm:$0xff]
    %v158 = vld [vmem:[#allocation8 + $0x70] sm:$0xff]
    %v159 = vld [vmem:[#allocation8 + $0x78] sm:$0xff]
    %v176 = vunpack.c.l.b16 %v144
    %v177 = vunpack.c.h.b16 %v144
    %v178 = vunpack.c.l.b16 %v145
    %v179 = vunpack.c.h.b16 %v145
    %v180 = vunpack.c.l.b16 %v146
    %v181 = vunpack.c.h.b16 %v146
    %v182 = vunpack.c.l.b16 %v147
    %v183 = vunpack.c.h.b16 %v147
    %v184 = vunpack.c.l.b16 %v148
    %v185 = vunpack.c.h.b16 %v148
    %v186 = vunpack.c.l.b16 %v149
    %v187 = vunpack.c.h.b16 %v149
    %v188 = vunpack.c.l.b16 %v150
    %v189 = vunpack.c.h.b16 %v150
    %v190 = vunpack.c.l.b16 %v151
    %v191 = vunpack.c.h.b16 %v151
    %v192 = vunpack.c.l.b16 %v152
    %v193 = vunpack.c.h.b16 %v152
    %v194 = vunpack.c.l.b16 %v153
    %v195 = vunpack.c.h.b16 %v153
    %v196 = vunpack.c.l.b16 %v154
    %v197 = vunpack.c.h.b16 %v154
    %v198 = vunpack.c.l.b16 %v155
    %v199 = vunpack.c.h.b16 %v155
    %v200 = vunpack.c.l.b16 %v156
    %v201 = vunpack.c.h.b16 %v156
    %v202 = vunpack.c.l.b16 %v157
    %v203 = vunpack.c.h.b16 %v157
    %v204 = vunpack.c.l.b16 %v158
    %v205 = vunpack.c.h.b16 %v158
    %v206 = vunpack.c.l.b16 %v159
    %v207 = vunpack.c.h.b16 %v159
    %v208 = vpack.c.b16 %v178, %v176
    %v209 = vpack.c.b16 %v179, %v177
    %v210 = vpack.c.b16 %v182, %v180
    %v211 = vpack.c.b16 %v183, %v181
    %v212 = vpack.c.b16 %v186, %v184
    %v213 = vpack.c.b16 %v187, %v185
    %v214 = vpack.c.b16 %v190, %v188
    %v215 = vpack.c.b16 %v191, %v189
    %v216 = vpack.c.b16 %v194, %v192
    %v217 = vpack.c.b16 %v195, %v193
    %v218 = vpack.c.b16 %v198, %v196
    %v219 = vpack.c.b16 %v199, %v197
    %v220 = vpack.c.b16 %v202, %v200
    %v221 = vpack.c.b16 %v203, %v201
    %v222 = vpack.c.b16 %v206, %v204
    %v223 = vpack.c.b16 %v207, %v205
    %240 = vmatprep.subr.bf16.mxu0 %v223
    %241 = vmatpush1.bf16.msra.mxu0 %v222
    %242 = vmatprep.subr.bf16.mxu0 %v221
    %243 = vmatpush1.bf16.msra.mxu0 %v220
    %244 = vmatprep.subr.bf16.mxu0 %v219
    %245 = vmatpush1.bf16.msra.mxu0 %v218
    %246 = vmatprep.subr.bf16.mxu0 %v217
    %247 = vmatpush1.bf16.msra.mxu0 %v216
    %248 = vmatprep.subr.bf16.mxu0 %v215
    %249 = vmatpush1.bf16.msra.mxu0 %v214
    %250 = vmatprep.subr.bf16.mxu0 %v213
    %251 = vmatpush1.bf16.msra.mxu0 %v212
    %252 = vmatprep.subr.bf16.mxu0 %v211
    %253 = vmatpush1.bf16.msra.mxu0 %v210
    %254 = vmatprep.subr.bf16.mxu0 %v209
    %255 = vmatpush1.bf16.msra.mxu0 %v208
    %256 = vmatprep.subr.bf16.mxu0 0
    %257 = vmatpush2.bf16.msra.mxu0 0
    %258 = vmatprep.subr.bf16.mxu0 0
    %259 = vmatpush2.bf16.msra.mxu0 0
    %260 = vmatprep.subr.bf16.mxu0 0
    %261 = vmatpush2.bf16.msra.mxu0 0
    %262 = vmatprep.subr.bf16.mxu0 0
    %263 = vmatpush2.bf16.msra.mxu0 0
    %264 = vmatprep.subr.bf16.mxu0 0
    %265 = vmatpush2.bf16.msra.mxu0 0
    %266 = vmatprep.subr.bf16.mxu0 0
    %267 = vmatpush2.bf16.msra.mxu0 0
    %268 = vmatprep.subr.bf16.mxu0 0
    %269 = vmatpush2.bf16.msra.mxu0 0
    %270 = vmatprep.subr.bf16.mxu0 0
    %271 = vmatpush2.bf16.msra.mxu0 0
    %272 = vmatprep.mubr.bf16.mxu0 0
    %273 = vmatmul.mubr.bf16.gmra.mxu0 %v127
    %v274 = vpop.f32.mrf.mxu0
    %v275 = vadd.f32 0.0, %v274
    %v276 = vpop.f32.mrf.mxu0
    %v277 = vadd.f32 0.0, %v276
    %v278 = vpop.f32.mrf.mxu0
    %v279 = vadd.f32 0.0, %v278
    %v280 = vpop.f32.mrf.mxu0
    %v281 = vadd.f32 0.0, %v280
    %282 = vdwg.mxu0
    %v299 = vunpack.c.l.b16 %v128
    %v300 = vunpack.c.h.b16 %v128
    %v301 = vunpack.c.l.b16 %v129
    %v302 = vunpack.c.h.b16 %v129
    %v303 = vunpack.c.l.b16 %v130
    %v304 = vunpack.c.h.b16 %v130
    %v305 = vunpack.c.l.b16 %v131
    %v306 = vunpack.c.h.b16 %v131
    %v307 = vunpack.c.l.b16 %v132
    %v308 = vunpack.c.h.b16 %v132
    %v309 = vunpack.c.l.b16 %v133
    %v310 = vunpack.c.h.b16 %v133
    %v311 = vunpack.c.l.b16 %v134
    %v312 = vunpack.c.h.b16 %v134
    %v313 = vunpack.c.l.b16 %v135
    %v314 = vunpack.c.h.b16 %v135
    %v315 = vunpack.c.l.b16 %v136
    %v316 = vunpack.c.h.b16 %v136
    %v317 = vunpack.c.l.b16 %v137
    %v318 = vunpack.c.h.b16 %v137
    %v319 = vunpack.c.l.b16 %v138
    %v320 = vunpack.c.h.b16 %v138
    %v321 = vunpack.c.l.b16 %v139
    %v322 = vunpack.c.h.b16 %v139
    %v323 = vunpack.c.l.b16 %v140
    %v324 = vunpack.c.h.b16 %v140
    %v325 = vunpack.c.l.b16 %v141
    %v326 = vunpack.c.h.b16 %v141
    %v327 = vunpack.c.l.b16 %v142
    %v328 = vunpack.c.h.b16 %v142
    %v329 = vunpack.c.l.b16 %v143
    %v330 = vunpack.c.h.b16 %v143
    %v331 = vpack.c.b16 %v301, %v299
    %v332 = vpack.c.b16 %v302, %v300
    %v333 = vpack.c.b16 %v305, %v303
    %v334 = vpack.c.b16 %v306, %v304
    %v335 = vpack.c.b16 %v309, %v307
    %v336 = vpack.c.b16 %v310, %v308
    %v337 = vpack.c.b16 %v313, %v311
    %v338 = vpack.c.b16 %v314, %v312
    %v339 = vpack.c.b16 %v317, %v315
    %v340 = vpack.c.b16 %v318, %v316
    %v341 = vpack.c.b16 %v321, %v319
    %v342 = vpack.c.b16 %v322, %v320
    %v343 = vpack.c.b16 %v325, %v323
    %v344 = vpack.c.b16 %v326, %v324
    %v345 = vpack.c.b16 %v329, %v327
    %v346 = vpack.c.b16 %v330, %v328
    %363 = vmatprep.subr.bf16.mxu0 %v346
    %364 = vmatpush1.bf16.msra.mxu0 %v345
    %365 = vmatprep.subr.bf16.mxu0 %v344
    %366 = vmatpush1.bf16.msra.mxu0 %v343
    %367 = vmatprep.subr.bf16.mxu0 %v342
    %368 = vmatpush1.bf16.msra.mxu0 %v341
    %369 = vmatprep.subr.bf16.mxu0 %v340
    %370 = vmatpush1.bf16.msra.mxu0 %v339
    %371 = vmatprep.subr.bf16.mxu0 %v338
    %372 = vmatpush1.bf16.msra.mxu0 %v337
    %373 = vmatprep.subr.bf16.mxu0 %v336
    %374 = vmatpush1.bf16.msra.mxu0 %v335
    %375 = vmatprep.subr.bf16.mxu0 %v334
    %376 = vmatpush1.bf16.msra.mxu0 %v333
    %377 = vmatprep.subr.bf16.mxu0 %v332
    %378 = vmatpush1.bf16.msra.mxu0 %v331
    %379 = vmatprep.subr.bf16.mxu0 0
    %380 = vmatpush2.bf16.msra.mxu0 0
    %381 = vmatprep.subr.bf16.mxu0 0
    %382 = vmatpush2.bf16.msra.mxu0 0
    %383 = vmatprep.subr.bf16.mxu0 0
    %384 = vmatpush2.bf16.msra.mxu0 0
    %385 = vmatprep.subr.bf16.mxu0 0
    %386 = vmatpush2.bf16.msra.mxu0 0
    %387 = vmatprep.subr.bf16.mxu0 0
    %388 = vmatpush2.bf16.msra.mxu0 0
    %389 = vmatprep.subr.bf16.mxu0 0
    %390 = vmatpush2.bf16.msra.mxu0 0
    %391 = vmatprep.subr.bf16.mxu0 0
    %392 = vmatpush2.bf16.msra.mxu0 0
    %393 = vmatprep.subr.bf16.mxu0 0
    %394 = vmatpush2.bf16.msra.mxu0 0
    %395 = vmatprep.mubr.bf16.mxu0 0
    %396 = vmatmul.mubr.bf16.gmra.mxu0 %v124
    %v397 = vpop.f32.mrf.mxu0
    %v398 = vadd.f32 %v275, %v397
    %v399 = vpop.f32.mrf.mxu0
    %v400 = vadd.f32 %v277, %v399
    %v401 = vpop.f32.mrf.mxu0
    %v402 = vadd.f32 %v279, %v401
    %v403 = vpop.f32.mrf.mxu0
    %v404 = vadd.f32 %v281, %v403
    %405 = vdwg.mxu0
    %v406 = vld [vmem:[%s4] sm:$0x3]
    %v408 = vlaneseq
    %v409 = vshrl.u32 %v408, 7
    %v410 = vsub.s32 0, %v409
    %v411 = vrot.slane %v406, %v410
    %v412 = vlaneseq
    %v413 = vshrl.u32 %v412, 7
    %v414 = vsub.s32 1, %v413
    %v415 = vrot.slane %v406, %v414
    %v418 = vadd.f32 %v398, %v411
    %v419 = vadd.f32 %v400, %v415
    %v420 = vadd.f32 %v402, %v411
    %v421 = vadd.f32 %v404, %v415
    %vm422 = vcmp.gt.f32.partialorder %v418, 0.0
    %vm423 = vcmp.gt.f32.partialorder %v419, 0.0
    %vm424 = vcmp.gt.f32.partialorder %v420, 0.0
    %vm425 = vcmp.gt.f32.partialorder %v421, 0.0
    %v426 = vmul.f32 %v418, 0.2
    %v427 = vmul.f32 %v419, 0.2
    %v428 = vmul.f32 %v420, 0.2
    %v429 = vmul.f32 %v421, 0.2
    %v430 = vsel %vm422, %v418, %v426
    %v431 = vsel %vm423, %v419, %v427
    %v432 = vsel %vm424, %v420, %v428
    %v433 = vsel %vm425, %v421, %v429
    %vm434 = vcmask 130048
    %v436 = vsel %vm434, 1.0, 0
    %438 = vmatprep.subr.mxu0 0.0
    %439 = vmatpush1.msra.mxu0 0.0
    %440 = vmatprep.subr.mxu0 0.0
    %441 = vmatpush1.msra.mxu0 0.0
    %442 = vmatprep.subr.mxu0 0.0
    %443 = vmatpush1.msra.mxu0 0.0
    %444 = vmatprep.subr.mxu0 0.0
    %445 = vmatpush1.msra.mxu0 0.0
    %446 = vmatprep.subr.mxu0 0.0
    %447 = vmatpush1.msra.mxu0 0.0
    %448 = vmatprep.subr.mxu0 0.0
    %449 = vmatpush1.msra.mxu0 0.0
    %450 = vmatprep.subr.mxu0 0.0
    %451 = vmatpush1.msra.mxu0 0.0
    %452 = vmatprep.subr.mxu0 0.0
    %453 = vmatpush1.msra.mxu0 0.0
    %454 = vmatprep.subr.mxu0 0.0
    %455 = vmatpush1.msra.mxu0 0.0
    %456 = vmatprep.subr.mxu0 0.0
    %457 = vmatpush1.msra.mxu0 0.0
    %458 = vmatprep.subr.mxu0 0.0
    %459 = vmatpush1.msra.mxu0 0.0
    %460 = vmatprep.subr.mxu0 0.0
    %461 = vmatpush1.msra.mxu0 0.0
    %462 = vmatprep.subr.mxu0 0.0
    %463 = vmatpush1.msra.mxu0 0.0
    %464 = vmatprep.subr.mxu0 0.0
    %465 = vmatpush1.msra.mxu0 0.0
    %466 = vmatprep.subr.mxu0 %v433
    %467 = vmatpush1.msra.mxu0 %v432
    %468 = vmatprep.subr.mxu0 %v431
    %469 = vmatpush1.msra.mxu0 %v430
    %470 = vmatprep.subr.mxu0 0.0
    %471 = vmatpush2.msra.mxu0 0.0
    %472 = vmatprep.subr.mxu0 0.0
    %473 = vmatpush2.msra.mxu0 0.0
    %474 = vmatprep.subr.mxu0 0.0
    %475 = vmatpush2.msra.mxu0 0.0
    %476 = vmatprep.subr.mxu0 0.0
    %477 = vmatpush2.msra.mxu0 0.0
    %478 = vmatprep.subr.mxu0 0.0
    %479 = vmatpush2.msra.mxu0 0.0
    %480 = vmatprep.subr.mxu0 0.0
    %481 = vmatpush2.msra.mxu0 0.0
    %482 = vmatprep.subr.mxu0 0.0
    %483 = vmatpush2.msra.mxu0 0.0
    %484 = vmatprep.subr.mxu0 0.0
    %485 = vmatpush2.msra.mxu0 0.0
    %486 = vmatprep.subr.mxu0 0.0
    %487 = vmatpush2.msra.mxu0 0.0
    %488 = vmatprep.subr.mxu0 0.0
    %489 = vmatpush2.msra.mxu0 0.0
    %490 = vmatprep.subr.mxu0 0.0
    %491 = vmatpush2.msra.mxu0 0.0
    %492 = vmatprep.subr.mxu0 0.0
    %493 = vmatpush2.msra.mxu0 0.0
    %494 = vmatprep.subr.mxu0 0.0
    %495 = vmatpush2.msra.mxu0 0.0
    %496 = vmatprep.subr.mxu0 0.0
    %497 = vmatpush2.msra.mxu0 0.0
    %498 = vmatprep.subr.mxu0 0.0
    %499 = vmatpush2.msra.mxu0 0.0
    %500 = vmatprep.subr.mxu0 0.0
    %501 = vmatpush2.msra.mxu0 0.0
    %502 = vmatprep.mubr.f32.mxu0 0.0
    %503 = vmatmul.mubr.f32.gmra.mxu0 %v436
    %v504 = vpop.f32.mrf.mxu0
    %v505 = vadd.f32 0.0, %v504
    %v506 = vpop.f32.mrf.mxu0
    %v507 = vadd.f32 0.0, %v506
    %508 = vdwg.mxu0
    %v509 = vmul.f32 %v430, %v430
    %v510 = vmul.f32 %v431, %v431
    %v511 = vmul.f32 %v432, %v432
    %v512 = vmul.f32 %v433, %v433
    %513 = vmatprep.subr.mxu0 0.0
    %514 = vmatpush1.msra.mxu0 0.0
    %515 = vmatprep.subr.mxu0 0.0
    %516 = vmatpush1.msra.mxu0 0.0
    %517 = vmatprep.subr.mxu0 0.0
    %518 = vmatpush1.msra.mxu0 0.0
    %519 = vmatprep.subr.mxu0 0.0
    %520 = vmatpush1.msra.mxu0 0.0
    %521 = vmatprep.subr.mxu0 0.0
    %522 = vmatpush1.msra.mxu0 0.0
    %523 = vmatprep.subr.mxu0 0.0
    %524 = vmatpush1.msra.mxu0 0.0
    %525 = vmatprep.subr.mxu0 0.0
    %526 = vmatpush1.msra.mxu0 0.0
    %527 = vmatprep.subr.mxu0 0.0
    %528 = vmatpush1.msra.mxu0 0.0
    %529 = vmatprep.subr.mxu0 0.0
    %530 = vmatpush1.msra.mxu0 0.0
    %531 = vmatprep.subr.mxu0 0.0
    %532 = vmatpush1.msra.mxu0 0.0
    %533 = vmatprep.subr.mxu0 0.0
    %534 = vmatpush1.msra.mxu0 0.0
    %535 = vmatprep.subr.mxu0 0.0
    %536 = vmatpush1.msra.mxu0 0.0
    %537 = vmatprep.subr.mxu0 0.0
    %538 = vmatpush1.msra.mxu0 0.0
    %539 = vmatprep.subr.mxu0 0.0
    %540 = vmatpush1.msra.mxu0 0.0
    %541 = vmatprep.subr.mxu0 %v512
    %542 = vmatpush1.msra.mxu0 %v511
    %543 = vmatprep.subr.mxu0 %v510
    %544 = vmatpush1.msra.mxu0 %v509
    %545 = vmatprep.subr.mxu0 0.0
    %546 = vmatpush2.msra.mxu0 0.0
    %547 = vmatprep.subr.mxu0 0.0
    %548 = vmatpush2.msra.mxu0 0.0
    %549 = vmatprep.subr.mxu0 0.0
    %550 = vmatpush2.msra.mxu0 0.0
    %551 = vmatprep.subr.mxu0 0.0
    %552 = vmatpush2.msra.mxu0 0.0
    %553 = vmatprep.subr.mxu0 0.0
    %554 = vmatpush2.msra.mxu0 0.0
    %555 = vmatprep.subr.mxu0 0.0
    %556 = vmatpush2.msra.mxu0 0.0
    %557 = vmatprep.subr.mxu0 0.0
    %558 = vmatpush2.msra.mxu0 0.0
    %559 = vmatprep.subr.mxu0 0.0
    %560 = vmatpush2.msra.mxu0 0.0
    %561 = vmatprep.subr.mxu0 0.0
    %562 = vmatpush2.msra.mxu0 0.0
    %563 = vmatprep.subr.mxu0 0.0
    %564 = vmatpush2.msra.mxu0 0.0
    %565 = vmatprep.subr.mxu0 0.0
    %566 = vmatpush2.msra.mxu0 0.0
    %567 = vmatprep.subr.mxu0 0.0
    %568 = vmatpush2.msra.mxu0 0.0
    %569 = vmatprep.subr.mxu0 0.0
    %570 = vmatpush2.msra.mxu0 0.0
    %571 = vmatprep.subr.mxu0 0.0
    %572 = vmatpush2.msra.mxu0 0.0
    %573 = vmatprep.subr.mxu0 0.0
    %574 = vmatpush2.msra.mxu0 0.0
    %575 = vmatprep.subr.mxu0 0.0
    %576 = vmatpush2.msra.mxu0 0.0
    %577 = vmatprep.mubr.f32.mxu0 0.0
    %578 = vmatmul.mubr.f32.gmra.mxu0 %v436
    %v579 = vpop.f32.mrf.mxu0
    %v580 = vadd.f32 0.0, %v579
    %v581 = vpop.f32.mrf.mxu0
    %v582 = vadd.f32 0.0, %v581
    %583 = vdwg.mxu0
    %584 = vrot.lane.b32.xlu0 %v505, 32
    %v585 = vpop.permute.xlu0 %584
    %586 = vrot.lane.b32.xlu0 %v507, 32
    %v587 = vpop.permute.xlu0 %586
    %v588 = vlaneseq
    %v589 = vand.u32 %v588, 127
    %vm590 = vcmp.lt.s32.totalorder %v589, 32
    %v591 = vsel %vm590, %v585, %v587
    %v592 = vsel %vm590, %v587, %v585
    %v593 = vadd.f32 %v505, %v592
    %v594 = vadd.f32 %v507, %v591
    %595 = vrot.lane.b32.xlu0 %v580, 32
    %v596 = vpop.permute.xlu0 %595
    %597 = vrot.lane.b32.xlu0 %v582, 32
    %v598 = vpop.permute.xlu0 %597
    %v599 = vsel %vm590, %v596, %v598
    %v600 = vsel %vm590, %v598, %v596
    %v601 = vadd.f32 %v580, %v600
    %v602 = vadd.f32 %v582, %v599
    %603 = vrot.lane.b32.xlu0 %v593, 64
    %v604 = vpop.permute.xlu0 %603
    %605 = vrot.lane.b32.xlu0 %v594, 64
    %v606 = vpop.permute.xlu0 %605
    %vm607 = vcmp.lt.s32.totalorder %v589, 64
    %v608 = vsel %vm607, %v604, %v606
    %v609 = vsel %vm607, %v606, %v604
    %v610 = vadd.f32 %v593, %v609
    %v611 = vadd.f32 %v594, %v608
    %612 = vrot.lane.b32.xlu0 %v601, 64
    %v613 = vpop.permute.xlu0 %612
    %614 = vrot.lane.b32.xlu0 %v602, 64
    %v615 = vpop.permute.xlu0 %614
    %v616 = vsel %vm607, %v613, %v615
    %v617 = vsel %vm607, %v615, %v613
    %v618 = vadd.f32 %v601, %v617
    %v619 = vadd.f32 %v602, %v616
    %v620 = vadd.f32 %v610, %v611
    %v621 = vadd.f32 %v618, %v619
    %v622 = vmul.f32 %v620, 0.0078125
    %v623 = vmul.f32 %v621, 0.0078125
    %v624 = vmul.f32 %v622, %v622
    %v625 = vsub.f32 %v623, %v624
    %v626 = vmax.f32 %v625, 0.0
    %v627 = vld [vmem:[%s5] sm:$0x3]
    %v628 = vadd.f32 %v626, 1e-05
    %v629 = vrsqrt.pop %v628
    %v631 = vcombine.low %v629, %v629
    %v633 = vunpack.c.l.s4 1966171168
    %v634 = vunpack.c.0.s8 %v633
    %v635 = vlaneseq
    %v636 = vshrl.u32 %v635, 7
    %v637 = vsub.s32 %v634, %v636
    %v638 = vrot.slane %v631, %v637
    %v640 = vunpack.c.l.s4 1966171168
    %v641 = vunpack.c.0.s8 %v640
    %v642 = vlaneseq
    %v643 = vshrl.u32 %v642, 7
    %v644 = vsub.s32 %v641, %v643
    %v645 = vrot.slane %v638, %v644
    %v647 = vmul.f32 %v627, %v645
    %v648 = vld [vmem:[%s6] sm:$0x3]
    %v650 = vlaneseq
    %v651 = vshrl.u32 %v650, 7
    %v652 = vsub.s32 0, %v651
    %v653 = vrot.slane %v647, %v652
    %v654 = vlaneseq
    %v655 = vshrl.u32 %v654, 7
    %v656 = vsub.s32 1, %v655
    %v657 = vrot.slane %v647, %v656
    %v660 = vmul.f32 %v622, %v653
    %v661 = vmul.f32 %v622, %v657
    %v664 = vcombine.low %v660, %v661
    %v666 = vunpack.c.l.s4 1966171168
    %v667 = vunpack.c.0.s8 %v666
    %v668 = vlaneseq
    %v669 = vshrl.u32 %v668, 7
    %v670 = vsub.s32 %v667, %v669
    %v671 = vrot.slane %v664, %v670
    %v673 = vunpack.c.l.s4 1966171168
    %v674 = vunpack.c.0.s8 %v673
    %v675 = vlaneseq
    %v676 = vshrl.u32 %v675, 7
    %v677 = vsub.s32 %v674, %v676
    %v678 = vrot.slane %v671, %v677
    %v680 = vsub.f32 %v648, %v678
    %v681 = vmul.f32 %v430, %v653
    %v682 = vmul.f32 %v431, %v657
    %v683 = vmul.f32 %v432, %v653
    %v684 = vmul.f32 %v433, %v657
    %v686 = vlaneseq
    %v687 = vshrl.u32 %v686, 7
    %v688 = vsub.s32 0, %v687
    %v689 = vrot.slane %v680, %v688
    %v690 = vlaneseq
    %v691 = vshrl.u32 %v690, 7
    %v692 = vsub.s32 1, %v691
    %v693 = vrot.slane %v680, %v692
    %v696 = vadd.f32 %v681, %v689
    %v697 = vadd.f32 %v682, %v693
    %v698 = vadd.f32 %v683, %v689
    %v699 = vadd.f32 %v684, %v693
    %v700 = vpack.c.bf16 %v698, %v696
    %v701 = vpack.c.bf16 %v699, %v697
    %v702 = vld [vmem:[#allocation10] sm:$0xff]
    %v703 = vld [vmem:[#allocation10 + $0x8] sm:$0xff]
    %v704 = vld [vmem:[#allocation10 + $0x10] sm:$0xff]
    %v705 = vld [vmem:[#allocation10 + $0x18] sm:$0xff]
    %v706 = vld [vmem:[#allocation10 + $0x20] sm:$0xff]
    %v707 = vld [vmem:[#allocation10 + $0x28] sm:$0xff]
    %v708 = vld [vmem:[#allocation10 + $0x30] sm:$0xff]
    %v709 = vld [vmem:[#allocation10 + $0x38] sm:$0xff]
    %v710 = vld [vmem:[#allocation10 + $0x40] sm:$0xff]
    %v711 = vld [vmem:[#allocation10 + $0x48] sm:$0xff]
    %v712 = vld [vmem:[#allocation10 + $0x50] sm:$0xff]
    %v713 = vld [vmem:[#allocation10 + $0x58] sm:$0xff]
    %v714 = vld [vmem:[#allocation10 + $0x60] sm:$0xff]
    %v715 = vld [vmem:[#allocation10 + $0x68] sm:$0xff]
    %v716 = vld [vmem:[#allocation10 + $0x70] sm:$0xff]
    %v717 = vld [vmem:[#allocation10 + $0x78] sm:$0xff]
    %v718 = vld [vmem:[#allocation10 + $0x80] sm:$0xff]
    %v719 = vld [vmem:[#allocation10 + $0x88] sm:$0xff]
    %v720 = vld [vmem:[#allocation10 + $0x90] sm:$0xff]
    %v721 = vld [vmem:[#allocation10 + $0x98] sm:$0xff]
    %v722 = vld [vmem:[#allocation10 + $0xa0] sm:$0xff]
    %v723 = vld [vmem:[#allocation10 + $0xa8] sm:$0xff]
    %v724 = vld [vmem:[#allocation10 + $0xb0] sm:$0xff]
    %v725 = vld [vmem:[#allocation10 + $0xb8] sm:$0xff]
    %v726 = vld [vmem:[#allocation10 + $0xc0] sm:$0xff]
    %v727 = vld [vmem:[#allocation10 + $0xc8] sm:$0xff]
    %v728 = vld [vmem:[#allocation10 + $0xd0] sm:$0xff]
    %v729 = vld [vmem:[#allocation10 + $0xd8] sm:$0xff]
    %v730 = vld [vmem:[#allocation10 + $0xe0] sm:$0xff]
    %v731 = vld [vmem:[#allocation10 + $0xe8] sm:$0xff]
    %v732 = vld [vmem:[#allocation10 + $0xf0] sm:$0xff]
    %v733 = vld [vmem:[#allocation10 + $0xf8] sm:$0xff]
    %v734 = vld [vmem:[%s8] sm:$0x3]
    %v736 = vlaneseq
    %v737 = vshrl.u32 %v736, 7
    %v738 = vsub.s32 0, %v737
    %v739 = vrot.slane %v734, %v738
    %v740 = vlaneseq
    %v741 = vshrl.u32 %v740, 7
    %v742 = vsub.s32 1, %v741
    %v743 = vrot.slane %v734, %v742
    %v778 = vunpack.c.l.b16 %v702
    %v779 = vunpack.c.h.b16 %v702
    %v780 = vunpack.c.l.b16 %v703
    %v781 = vunpack.c.h.b16 %v703
    %v782 = vunpack.c.l.b16 %v704
    %v783 = vunpack.c.h.b16 %v704
    %v784 = vunpack.c.l.b16 %v705
    %v785 = vunpack.c.h.b16 %v705
    %v786 = vunpack.c.l.b16 %v706
    %v787 = vunpack.c.h.b16 %v706
    %v788 = vunpack.c.l.b16 %v707
    %v789 = vunpack.c.h.b16 %v707
    %v790 = vunpack.c.l.b16 %v708
    %v791 = vunpack.c.h.b16 %v708
    %v792 = vunpack.c.l.b16 %v709
    %v793 = vunpack.c.h.b16 %v709
    %v794 = vunpack.c.l.b16 %v710
    %v795 = vunpack.c.h.b16 %v710
    %v796 = vunpack.c.l.b16 %v711
    %v797 = vunpack.c.h.b16 %v711
    %v798 = vunpack.c.l.b16 %v712
    %v799 = vunpack.c.h.b16 %v712
    %v800 = vunpack.c.l.b16 %v713
    %v801 = vunpack.c.h.b16 %v713
    %v802 = vunpack.c.l.b16 %v714
    %v803 = vunpack.c.h.b16 %v714
    %v804 = vunpack.c.l.b16 %v715
    %v805 = vunpack.c.h.b16 %v715
    %v806 = vunpack.c.l.b16 %v716
    %v807 = vunpack.c.h.b16 %v716
    %v808 = vunpack.c.l.b16 %v717
    %v809 = vunpack.c.h.b16 %v717
    %v810 = vunpack.c.l.b16 %v718
    %v811 = vunpack.c.h.b16 %v718
    %v812 = vunpack.c.l.b16 %v719
    %v813 = vunpack.c.h.b16 %v719
    %v814 = vunpack.c.l.b16 %v720
    %v815 = vunpack.c.h.b16 %v720
    %v816 = vunpack.c.l.b16 %v721
    %v817 = vunpack.c.h.b16 %v721
    %v818 = vunpack.c.l.b16 %v722
    %v819 = vunpack.c.h.b16 %v722
    %v820 = vunpack.c.l.b16 %v723
    %v821 = vunpack.c.h.b16 %v723
    %v822 = vunpack.c.l.b16 %v724
    %v823 = vunpack.c.h.b16 %v724
    %v824 = vunpack.c.l.b16 %v725
    %v825 = vunpack.c.h.b16 %v725
    %v826 = vunpack.c.l.b16 %v726
    %v827 = vunpack.c.h.b16 %v726
    %v828 = vunpack.c.l.b16 %v727
    %v829 = vunpack.c.h.b16 %v727
    %v830 = vunpack.c.l.b16 %v728
    %v831 = vunpack.c.h.b16 %v728
    %v832 = vunpack.c.l.b16 %v729
    %v833 = vunpack.c.h.b16 %v729
    %v834 = vunpack.c.l.b16 %v730
    %v835 = vunpack.c.h.b16 %v730
    %v836 = vunpack.c.l.b16 %v731
    %v837 = vunpack.c.h.b16 %v731
    %v838 = vunpack.c.l.b16 %v732
    %v839 = vunpack.c.h.b16 %v732
    %v840 = vunpack.c.l.b16 %v733
    %v841 = vunpack.c.h.b16 %v733
    %v842 = vpack.c.b16 %v780, %v778
    %v843 = vpack.c.b16 %v781, %v779
    %v844 = vpack.c.b16 %v784, %v782
    %v845 = vpack.c.b16 %v785, %v783
    %v846 = vpack.c.b16 %v788, %v786
    %v847 = vpack.c.b16 %v789, %v787
    %v848 = vpack.c.b16 %v792, %v790
    %v849 = vpack.c.b16 %v793, %v791
    %v850 = vpack.c.b16 %v796, %v794
    %v851 = vpack.c.b16 %v797, %v795
    %v852 = vpack.c.b16 %v800, %v798
    %v853 = vpack.c.b16 %v801, %v799
    %v854 = vpack.c.b16 %v804, %v802
    %v855 = vpack.c.b16 %v805, %v803
    %v856 = vpack.c.b16 %v808, %v806
    %v857 = vpack.c.b16 %v809, %v807
    %v858 = vpack.c.b16 %v812, %v810
    %v859 = vpack.c.b16 %v813, %v811
    %v860 = vpack.c.b16 %v816, %v814
    %v861 = vpack.c.b16 %v817, %v815
    %v862 = vpack.c.b16 %v820, %v818
    %v863 = vpack.c.b16 %v821, %v819
    %v864 = vpack.c.b16 %v824, %v822
    %v865 = vpack.c.b16 %v825, %v823
    %v866 = vpack.c.b16 %v828, %v826
    %v867 = vpack.c.b16 %v829, %v827
    %v868 = vpack.c.b16 %v832, %v830
    %v869 = vpack.c.b16 %v833, %v831
    %v870 = vpack.c.b16 %v836, %v834
    %v871 = vpack.c.b16 %v837, %v835
    %v872 = vpack.c.b16 %v840, %v838
    %v873 = vpack.c.b16 %v841, %v839
    %906 = vmatprep.subr.bf16.mxu0 %v857
    %907 = vmatpush1.bf16.msra.mxu0 %v856
    %908 = vmatprep.subr.bf16.mxu0 %v855
    %909 = vmatpush1.bf16.msra.mxu0 %v854
    %910 = vmatprep.subr.bf16.mxu0 %v853
    %911 = vmatpush1.bf16.msra.mxu0 %v852
    %912 = vmatprep.subr.bf16.mxu0 %v851
    %913 = vmatpush1.bf16.msra.mxu0 %v850
    %914 = vmatprep.subr.bf16.mxu0 %v849
    %915 = vmatpush1.bf16.msra.mxu0 %v848
    %916 = vmatprep.subr.bf16.mxu0 %v847
    %917 = vmatpush1.bf16.msra.mxu0 %v846
    %918 = vmatprep.subr.bf16.mxu0 %v845
    %919 = vmatpush1.bf16.msra.mxu0 %v844
    %920 = vmatprep.subr.bf16.mxu0 %v843
    %921 = vmatpush1.bf16.msra.mxu0 %v842
    %922 = vmatprep.subr.bf16.mxu0 %v873
    %923 = vmatpush2.bf16.msra.mxu0 %v872
    %924 = vmatprep.subr.bf16.mxu0 %v871
    %925 = vmatpush2.bf16.msra.mxu0 %v870
    %926 = vmatprep.subr.bf16.mxu0 %v869
    %927 = vmatpush2.bf16.msra.mxu0 %v868
    %928 = vmatprep.subr.bf16.mxu0 %v867
    %929 = vmatpush2.bf16.msra.mxu0 %v866
    %930 = vmatprep.subr.bf16.mxu0 %v865
    %931 = vmatpush2.bf16.msra.mxu0 %v864
    %932 = vmatprep.subr.bf16.mxu0 %v863
    %933 = vmatpush2.bf16.msra.mxu0 %v862
    %934 = vmatprep.subr.bf16.mxu0 %v861
    %935 = vmatpush2.bf16.msra.mxu0 %v860
    %936 = vmatprep.subr.bf16.mxu0 %v859
    %937 = vmatpush2.bf16.msra.mxu0 %v858
    %938 = vmatprep.mubr.bf16.mxu0 %v701
    %939 = vmatmul.mubr.bf16.gmra.mxu0 %v700
    %v940 = vpop.f32.mrf.mxu0
    %v941 = vadd.f32 %v739, %v940
    %v942 = vpop.f32.mrf.mxu0
    %v943 = vadd.f32 %v743, %v942
    %v944 = vpop.f32.mrf.mxu0
    %v945 = vadd.f32 %v739, %v944
    %v946 = vpop.f32.mrf.mxu0
    %v947 = vadd.f32 %v743, %v946
    %948 = vdwg.mxu0
    %vm949 = vcmp.gt.f32.partialorder %v941, 0.0
    %vm950 = vcmp.gt.f32.partialorder %v943, 0.0
    %vm951 = vcmp.gt.f32.partialorder %v945, 0.0
    %vm952 = vcmp.gt.f32.partialorder %v947, 0.0
    %v953 = vmul.f32 %v941, 0.2
    %v954 = vmul.f32 %v943, 0.2
    %v955 = vmul.f32 %v945, 0.2
    %v956 = vmul.f32 %v947, 0.2
    %v957 = vsel %vm949, %v941, %v953
    %v958 = vsel %vm950, %v943, %v954
    %v959 = vsel %vm951, %v945, %v955
    %v960 = vsel %vm952, %v947, %v956
    %v961 = vpack.c.bf16 %v959, %v957
    %v962 = vpack.c.bf16 %v960, %v958
    %v963 = vld [vmem:[#allocation11] sm:$0xf]
    %v964 = vld [vmem:[#allocation11 + $0x4] sm:$0xf]
    %v965 = vld [vmem:[#allocation11 + $0x8] sm:$0xf]
    %v966 = vld [vmem:[#allocation11 + $0xc] sm:$0xf]
    %v967 = vld [vmem:[#allocation11 + $0x10] sm:$0xf]
    %v968 = vld [vmem:[#allocation11 + $0x14] sm:$0xf]
    %v969 = vld [vmem:[#allocation11 + $0x18] sm:$0xf]
    %v970 = vld [vmem:[#allocation11 + $0x1c] sm:$0xf]
    %v971 = vld [vmem:[#allocation11 + $0x20] sm:$0xf]
    %v972 = vld [vmem:[#allocation11 + $0x24] sm:$0xf]
    %v973 = vld [vmem:[#allocation11 + $0x28] sm:$0xf]
    %v974 = vld [vmem:[#allocation11 + $0x2c] sm:$0xf]
    %v975 = vld [vmem:[#allocation11 + $0x30] sm:$0xf]
    %v976 = vld [vmem:[#allocation11 + $0x34] sm:$0xf]
    %v977 = vld [vmem:[#allocation11 + $0x38] sm:$0xf]
    %v978 = vld [vmem:[#allocation11 + $0x3c] sm:$0xf]
    %v979 = vld [vmem:[#allocation11 + $0x40] sm:$0xf]
    %v980 = vld [vmem:[#allocation11 + $0x44] sm:$0xf]
    %v981 = vld [vmem:[#allocation11 + $0x48] sm:$0xf]
    %v982 = vld [vmem:[#allocation11 + $0x4c] sm:$0xf]
    %v983 = vld [vmem:[#allocation11 + $0x50] sm:$0xf]
    %v984 = vld [vmem:[#allocation11 + $0x54] sm:$0xf]
    %v985 = vld [vmem:[#allocation11 + $0x58] sm:$0xf]
    %v986 = vld [vmem:[#allocation11 + $0x5c] sm:$0xf]
    %v987 = vld [vmem:[#allocation11 + $0x60] sm:$0xf]
    %v988 = vld [vmem:[#allocation11 + $0x64] sm:$0xf]
    %v989 = vld [vmem:[#allocation11 + $0x68] sm:$0xf]
    %v990 = vld [vmem:[#allocation11 + $0x6c] sm:$0xf]
    %v991 = vld [vmem:[#allocation11 + $0x70] sm:$0xf]
    %v992 = vld [vmem:[#allocation11 + $0x74] sm:$0xf]
    %v993 = vld [vmem:[#allocation11 + $0x78] sm:$0xf]
    %v994 = vld [vmem:[#allocation11 + $0x7c] sm:$0xf]
    %v995 = vld [vmem:[%s10] sm:$0x1]
    %v997 = vlaneseq
    %v998 = vshrl.u32 %v997, 7
    %v999 = vsub.s32 0, %v998
    %v1000 = vrot.slane %v995, %v999
    %v1034 = vunpack.c.l.b16 %v963
    %v1035 = vunpack.c.l.b16 %v964
    %v1036 = vunpack.c.l.b16 %v965
    %v1037 = vunpack.c.l.b16 %v966
    %v1038 = vunpack.c.l.b16 %v967
    %v1039 = vunpack.c.l.b16 %v968
    %v1040 = vunpack.c.l.b16 %v969
    %v1041 = vunpack.c.l.b16 %v970
    %v1042 = vunpack.c.l.b16 %v971
    %v1043 = vunpack.c.l.b16 %v972
    %v1044 = vunpack.c.l.b16 %v973
    %v1045 = vunpack.c.l.b16 %v974
    %v1046 = vunpack.c.l.b16 %v975
    %v1047 = vunpack.c.l.b16 %v976
    %v1048 = vunpack.c.l.b16 %v977
    %v1049 = vunpack.c.l.b16 %v978
    %v1050 = vunpack.c.l.b16 %v979
    %v1051 = vunpack.c.l.b16 %v980
    %v1052 = vunpack.c.l.b16 %v981
    %v1053 = vunpack.c.l.b16 %v982
    %v1054 = vunpack.c.l.b16 %v983
    %v1055 = vunpack.c.l.b16 %v984
    %v1056 = vunpack.c.l.b16 %v985
    %v1057 = vunpack.c.l.b16 %v986
    %v1058 = vunpack.c.l.b16 %v987
    %v1059 = vunpack.c.l.b16 %v988
    %v1060 = vunpack.c.l.b16 %v989
    %v1061 = vunpack.c.l.b16 %v990
    %v1062 = vunpack.c.l.b16 %v991
    %v1063 = vunpack.c.l.b16 %v992
    %v1064 = vunpack.c.l.b16 %v993
    %v1065 = vunpack.c.l.b16 %v994
    %v1066 = vpack.c.b16 %v1035, %v1034
    %v1067 = vpack.c.b16 %v1037, %v1036
    %v1068 = vpack.c.b16 %v1039, %v1038
    %v1069 = vpack.c.b16 %v1041, %v1040
    %v1070 = vpack.c.b16 %v1043, %v1042
    %v1071 = vpack.c.b16 %v1045, %v1044
    %v1072 = vpack.c.b16 %v1047, %v1046
    %v1073 = vpack.c.b16 %v1049, %v1048
    %v1074 = vpack.c.b16 %v1051, %v1050
    %v1075 = vpack.c.b16 %v1053, %v1052
    %v1076 = vpack.c.b16 %v1055, %v1054
    %v1077 = vpack.c.b16 %v1057, %v1056
    %v1078 = vpack.c.b16 %v1059, %v1058
    %v1079 = vpack.c.b16 %v1061, %v1060
    %v1080 = vpack.c.b16 %v1063, %v1062
    %v1081 = vpack.c.b16 %v1065, %v1064
    %1098 = vmatprep.subr.bf16.mxu0 0
    %1099 = vmatpush1.bf16.msra.mxu0 %v1073
    %1100 = vmatprep.subr.bf16.mxu0 0
    %1101 = vmatpush1.bf16.msra.mxu0 %v1072
    %1102 = vmatprep.subr.bf16.mxu0 0
    %1103 = vmatpush1.bf16.msra.mxu0 %v1071
    %1104 = vmatprep.subr.bf16.mxu0 0
    %1105 = vmatpush1.bf16.msra.mxu0 %v1070
    %1106 = vmatprep.subr.bf16.mxu0 0
    %1107 = vmatpush1.bf16.msra.mxu0 %v1069
    %1108 = vmatprep.subr.bf16.mxu0 0
    %1109 = vmatpush1.bf16.msra.mxu0 %v1068
    %1110 = vmatprep.subr.bf16.mxu0 0
    %1111 = vmatpush1.bf16.msra.mxu0 %v1067
    %1112 = vmatprep.subr.bf16.mxu0 0
    %1113 = vmatpush1.bf16.msra.mxu0 %v1066
    %1114 = vmatprep.subr.bf16.mxu0 0
    %1115 = vmatpush2.bf16.msra.mxu0 %v1081
    %1116 = vmatprep.subr.bf16.mxu0 0
    %1117 = vmatpush2.bf16.msra.mxu0 %v1080
    %1118 = vmatprep.subr.bf16.mxu0 0
    %1119 = vmatpush2.bf16.msra.mxu0 %v1079
    %1120 = vmatprep.subr.bf16.mxu0 0
    %1121 = vmatpush2.bf16.msra.mxu0 %v1078
    %1122 = vmatprep.subr.bf16.mxu0 0
    %1123 = vmatpush2.bf16.msra.mxu0 %v1077
    %1124 = vmatprep.subr.bf16.mxu0 0
    %1125 = vmatpush2.bf16.msra.mxu0 %v1076
    %1126 = vmatprep.subr.bf16.mxu0 0
    %1127 = vmatpush2.bf16.msra.mxu0 %v1075
    %1128 = vmatprep.subr.bf16.mxu0 0
    %1129 = vmatpush2.bf16.msra.mxu0 %v1074
    %1130 = vmatprep.mubr.bf16.mxu0 %v962
    %1131 = vmatmul.mubr.bf16.gmra.mxu0 %v961
    %v1132 = vpop.f32.mrf.mxu0
    %v1133 = vadd.f32 %v1000, %v1132
    %v1134 = vpop.f32.mrf.mxu0
    %v1135 = vpop.f32.mrf.mxu0
    %v1136 = vadd.f32 %v1000, %v1135
    %v1137 = vpop.f32.mrf.mxu0
    %1138 = vdwg.mxu0
    %1139 = vst [vmem:[#allocation13] sm:$0xff] %v1133
    %1140 = vst [vmem:[#allocation13 + $0x8] sm:$0xff] %v1136
    // Predicated region
    $region70: #{tpu_custom_call.1} parent=1 // pred_check
      _
    $region71: #{tpu_custom_call.1} parent=1 // pred_check_branch
      %1142 = sbr.rel (0) target = $region73
    $region72: #{tpu_custom_call.1} parent=1 // pred_region
      %s1144 = ssub.s32 256, 256
      %1145 = vsyncadd [#allocation4], %s1144
      %s1146 = sshll.u32 [#allocation13], 4
      %s1147 = int_to_ptr.vmem [resolvable:$true] %s1146
      %1152 = dma.vmem_to_hbm [thread:$0]  %s1147, 256, %s11, [#allocation4], 128, 128, 8
    $region73: #{tpu_custom_call.1} parent=1 // pred_fallthru
      _
    // Predicated region
    $region74: #{tpu_custom_call.1} parent=1 // pred_check
      _
    $region75: #{tpu_custom_call.1} parent=1 // pred_check_branch
      %1154 = sbr.rel (0) target = $region77
    $region76: #{tpu_custom_call.1} parent=1 // pred_region
      %1155 = dma.done [#allocation4], 256
    $region77: #{tpu_custom_call.1} parent=1 // pred_fallthru
      _
    %1156 = vsyncpa [#allocation3], 1
    %1157 = vsyncpa [#allocation6], 1
    %1158 = vsyncpa [#allocation9], 1
    %1159 = vsyncpa [#allocation12], 1
    %1160 = vsyncpa [#allocation4], 1

</llo_original>
